<compile_context>
chip_gen: v6e
topology: v6e:2x2x1
jax: 0.10.0
libtpu: 0.0.40
codegen_flags: <defaults>
</compile_context>

<pallas_src>
import jax
import jax.numpy as jnp
from jax import lax
from jax.experimental import pallas as pl
from jax.experimental.pallas import tpu as pltpu


# ----------------------------------------------------------------------------
# Kernel
# ----------------------------------------------------------------------------
def _permute_kernel(x_ref, o_ref):
    # x_ref: (tBC, tH, tW) block  ->  o_ref: (tBC, tW, tH) block
    # Per-plane transpose: avoids a full block-sized transposed temporary in
    # VMEM and lets the LLO scheduler interleave vld / XLU vxpose / vst slots.
    def body(n, carry):
        o_ref[n] = x_ref[n].T
        return carry

    lax.fori_loop(0, x_ref.shape[0], body, 0)


# ----------------------------------------------------------------------------
# Tiling / VMEM heuristics
# ----------------------------------------------------------------------------
def _padded_plane_bytes(rows, cols, itemsize):
    """VMEM footprint of one (rows, cols) 2-D slice after (sublane, lane) padding.

    Last dim pads to a multiple of 128 lanes; second-to-last pads to the
    sublane-packing multiple (8 for 4-byte, 16 for 2-byte, 32 for 1-byte dtypes).
    """
    sub = max(8, 32 // max(itemsize, 1))
    pr = pl.cdiv(rows, sub) * sub
    pc = pl.cdiv(cols, 128) * 128
    return pr * pc * itemsize


def _vmem_config():
    """(vmem_limit_bytes, per_input_block_budget_bytes) tuned per TPU generation."""
    try:
        cap = int(pltpu.get_tpu_info().vmem_capacity_bytes)
    except Exception:
        cap = 64 * 1024 * 1024  # unknown: assume the tightest generation (v7x)
    if cap >= 100 * 1024 * 1024:
        # v5e / v6e (128 MiB physical): 48 MiB scoped limit, ~4 MiB input blocks.
        # (4 MiB is at the top of the useful range for v5e's earlier HBM-bound
        #  roofline and squarely in the 85%+ regime for v6e.)
        return 48 * 1024 * 1024, 4 * 1024 * 1024
    # v7x (64 MiB physical, 32 MiB default scoped): stay inside 32 MiB, keep
    # blocks modest so in+out double-buffering fits with headroom.
    return 32 * 1024 * 1024, 2 * 1024 * 1024


def _spatial_tile(dim, cap=512):
    """Full extent when small; otherwise the largest multiple-of-128 divisor of
    `dim` (<= cap) so every grid step stores an unmasked, evenly-divided tile;
    fall back to a plain 512 tile if no such divisor exists."""
    if dim <= cap:
        return dim
    for cand in range(cap, 0, -128):
        if dim % cand == 0:
            return cand
    return 512


def _choose_tiles(bc, h, w, itemsize, vmem_limit, block_budget):
    """Pick (tBC, tH, tW) using PADDED block sizes for the VMEM math."""
    th = _spatial_tile(h)
    tw = _spatial_tile(w)

    in_plane = _padded_plane_bytes(th, tw, itemsize)
    out_plane = _padded_plane_bytes(tw, th, itemsize)
    pair = in_plane + out_plane

    # Hard constraint: double-buffered (input + output) blocks must fit well
    # inside the scoped VMEM limit (25% headroom for compiler scratch).
    hard_cap = (vmem_limit * 3) // 4
    max_tbc_hard = max(1, hard_cap // (2 * pair))
    # Soft target: keep the (padded) input block around the per-generation budget.
    max_tbc_budget = max(1, block_budget // max(in_plane, 1))

    tbc = int(max(1, min(bc, max_tbc_hard, max_tbc_budget)))
    return tbc, th, tw


def _maybe_split_for_two_cores(bc, h, w, tbc, th, tw):
    """If the grid collapses to a single block, split it so both v7x TensorCores
    get work (harmless ~0.35us extra step on single-TC generations)."""
    n_blocks = pl.cdiv(bc, tbc) * pl.cdiv(h, th) * pl.cdiv(w, tw)
    if n_blocks >= 2:
        return tbc, th, tw
    if bc >= 2:
        return pl.cdiv(bc, 2), th, tw
    # bc == 1: halve a spatial axis, but only if the half stays 128-aligned
    # (required for unmasked lanes on the block that becomes non-full-extent).
    if th == h and h % 256 == 0:
        return tbc, h // 2, tw
    if tw == w and w % 256 == 0:
        return tbc, th, w // 2
    return tbc, th, tw


# ----------------------------------------------------------------------------
# Public wrapper
# ----------------------------------------------------------------------------
def permute_last_dims(x):
    """Equivalent of torch's x.permute(0, 1, 3, 2) for a 4-D array."""
    B, C, H, W = x.shape

    # Fast path: with either spatial dim below one lane (128), the Pallas kernel
    # would pay masked vst.msk stores and 8-32x padded vregs/VMEM; XLA's own
    # transpose (or fusing the permute into the consumer) is strictly better.
    if H < 128 or W < 128:
        return jnp.swapaxes(x, -1, -2)

    BC = B * C
    itemsize = jnp.dtype(x.dtype).itemsize
    vmem_limit, block_budget = _vmem_config()

    tBC, tH, tW = _choose_tiles(BC, H, W, itemsize, vmem_limit, block_budget)
    tBC, tH, tW = _maybe_split_for_two_cores(BC, H, W, tBC, tH, tW)

    x3 = x.reshape(BC, H, W)  # free: contiguous reshape
    grid = (pl.cdiv(BC, tBC), pl.cdiv(H, tH), pl.cdiv(W, tW))

    out3 = pl.pallas_call(
        _permute_kernel,
        out_shape=jax.ShapeDtypeStruct((BC, W, H), x.dtype),
        grid_spec=pl.GridSpec(
            grid=grid,
            in_specs=[
                pl.BlockSpec((tBC, tH, tW), lambda bc, i, j: (bc, i, j)),
            ],
            # Output spatial block indices are swapped relative to the input.
            out_specs=pl.BlockSpec((tBC, tW, tH), lambda bc, i, j: (bc, j, i)),
        ),
        compiler_params=pltpu.CompilerParams(
            dimension_semantics=("parallel", "parallel", "parallel"),
            vmem_limit_bytes=vmem_limit,
        ),
        cost_estimate=pl.CostEstimate(
            flops=0,
            transcendentals=0,
            bytes_accessed=2 * x.size * itemsize,  # pure read + write
        ),
    )(x3)

    return out3.reshape(B, C, W, H)


# ----------------------------------------------------------------------------
# Self-test
# ----------------------------------------------------------------------------
if __name__ == "__main__":
    key = jax.random.PRNGKey(0)

    # Primary (small) check, consistent with the module's 4-D image-like input.
    # H = W = 16 < 128 -> exercises the small-spatial fast path.
    x = jax.random.normal(key, (2, 4, 16, 16), dtype=jnp.float32)
    y = jax.block_until_ready(permute_last_dims(x))
    ref = jnp.transpose(x, (0, 1, 3, 2))
    assert y.shape == (2, 4, 16, 16)
    assert y.dtype == x.dtype
    assert bool(jnp.array_equal(y, ref))

    # Tiled-spatial Pallas path (H = 1024 > 512 -> tH = 512, tW full).
    x2 = jax.random.normal(jax.random.PRNGKey(0), (1, 2, 1024, 256), dtype=jnp.float32)
    y2 = jax.block_until_ready(permute_last_dims(x2))
    ref2 = jnp.transpose(x2, (0, 1, 3, 2))
    assert y2.shape == (1, 2, 256, 1024)
    assert bool(jnp.array_equal(y2, ref2))

    # Full-extent spatial + single-block grid -> two-core split path (H halved).
    x3 = jax.random.normal(jax.random.PRNGKey(0), (1, 1, 256, 128), dtype=jnp.float32)
    y3 = jax.block_until_ready(permute_last_dims(x3))
    ref3 = jnp.transpose(x3, (0, 1, 3, 2))
    assert y3.shape == (1, 1, 128, 256)
    assert bool(jnp.array_equal(y3, ref3))

    # bf16 coverage (different sublane packing in the padded-VMEM budgeting).
    x4 = jax.random.normal(jax.random.PRNGKey(0), (2, 2, 128, 256)).astype(jnp.bfloat16)
    y4 = jax.block_until_ready(permute_last_dims(x4))
    ref4 = jnp.transpose(x4, (0, 1, 3, 2))
    assert y4.shape == (2, 2, 256, 128)
    assert bool(jnp.array_equal(y4, ref4))

    print("KERNEL_OK")
</pallas_src>

<mosaic_0001>
module attributes {stable_mosaic.version = 11 : i64} {
  func.func @_permute_kernel(%arg0: i32, %arg1: i32, %arg2: i32, %arg3: memref<2x512x256xf32, #tpu.memory_space<vmem>>, %arg4: memref<2x256x512xf32, #tpu.memory_space<vmem>>) attributes {dimension_semantics = [#tpu.dimension_semantics<parallel>, #tpu.dimension_semantics<parallel>, #tpu.dimension_semantics<parallel>], iteration_bounds = array<i64: 1, 2, 1>, scalar_prefetch = 0 : i64, scratch_operands = 0 : i64, tpu.core_type = #tpu.core_type<tc>, window_params = [{transform_indices = @transform_0, window_bounds = array<i64: 2, 512, 256>}, {transform_indices = @transform_1, window_bounds = array<i64: 2, 256, 512>}]} {
    %c0_i32 = arith.constant 0 : i32
    %c2_i32 = arith.constant 2 : i32
    %0 = arith.addi %c0_i32, %c2_i32 : i32
    %c1_i32 = arith.constant 1 : i32
    scf.for %arg5 = %c0_i32 to %0 step %c1_i32  : i32 {
      %1 = arith.index_cast %arg5 : i32 to index
      %c0 = arith.constant 0 : index
      %c0_1 = arith.constant 0 : index
      %2 = vector.load %arg3[%1, %c0, %c0_1] : memref<2x512x256xf32, #tpu.memory_space<vmem>>, vector<1x512x256xf32>
      %3 = vector.shape_cast %2 : vector<1x512x256xf32> to vector<512x256xf32>
      %4 = tpu.transpose %3, [1, 0] : vector<512x256xf32> -> vector<256x512xf32>
      %5 = arith.index_cast %arg5 : i32 to index
      %c0_2 = arith.constant 0 : index
      %c0_3 = arith.constant 0 : index
      %6 = vector.load %arg4[%5, %c0_2, %c0_3] : memref<2x256x512xf32, #tpu.memory_space<vmem>>, vector<1x256x512xf32>
      %7 = vector.shape_cast %6 : vector<1x256x512xf32> to vector<256x512xf32>
      %8 = vector.shape_cast %4 : vector<256x512xf32> to vector<1x256x512xf32>
      tpu.vector_store %arg4[%5, %c0_2, %c0_3], %8 {strides = array<i32>} : memref<2x256x512xf32, #tpu.memory_space<vmem>>, vector<1x256x512xf32>,
    }
    %c2_i32_0 = arith.constant 2 : i32
    return
  }
  func.func @transform_0(%arg0: i32, %arg1: i32, %arg2: i32) -> (i32, i32, i32) {
    %c0_i32 = arith.constant 0 : i32
    return %arg0, %arg1, %arg2 : i32, i32, i32
  }
  func.func @transform_1(%arg0: i32, %arg1: i32, %arg2: i32) -> (i32, i32, i32) {
    %c0_i32 = arith.constant 0 : i32
    return %arg0, %arg2, %arg1 : i32, i32, i32
  }
}

</mosaic_0001>

<llo_original>
// kernel: tpu_custom_call.1
$region0: #{tpu_custom_call.1}
  #allocation0 [shape = 'u32[]', space=smem, size = 0x4, offset = 0x4, fixed_abs, tag = 'smem constant byte address 0x4 - core index']
  #allocation1 [shape = 'u32[144,128]{1,0:T(1,128)}', space=vmem, size = 0x12000, scoped, tag = 'internal scratch']
  #allocation6 [shape = 's32[]', space=sflag, size = 0x4, offset = 0, fixed_abs, tag = 'sflag constant byte address 0x0 - dummy sync flag']
  %s0 = inlined_call_operand.hbm [shape: f32[2,1024,256], index: 0, kind: input, shape index: {}]
  %s1 = inlined_call_operand.hbm [shape: f32[2,256,1024], index: 1, kind: output, shape index: {}]
  %s2 = sld [smem:[#allocation0]]
  $region48: #{tpu_custom_call.1} parent=0
    _
  %s4 = ssub.s32 1, %s2
  %s5 = scalar_select 0, %s4, %s2
  $region1: #{tpu_custom_call.1} parent=0
    #allocation2 [shape = 'u8[2097152]{0}', space=vmem, size = 0x200000, scoped, tag = 'input window, operand 0']
    #allocation3 [shape = 's32[2]{0}', space=sflag, size = 0x8, scoped, tag = 'scoped memory for tpu_custom_call.1']
    #allocation4 [shape = 's32[2]{0}', space=sflag, size = 0x8, scoped, tag = 'scoped memory for tpu_custom_call.1']
    #allocation5 [shape = 'u8[2097152]{0}', space=vmem, size = 0x200000, scoped, tag = 'output window, operand 0']
    %6 = vsyncpa [#allocation3], 0
    %s7 = scalar_lea.sflag [#allocation3], 1
    %8 = vsyncpa %s7, 0
    %9 = vsyncpa [#allocation4], 0
    %s10 = scalar_lea.sflag [#allocation4], 1
    %11 = vsyncpa %s10, 0
    loop: start=0, step=1, limit=4
    $region2: #{tpu_custom_call.1} parent=1 // loop_pre_header
      _
    $region3: #{tpu_custom_call.1} parent=1 // loop_header
      %s13 = sphi 0, %s17
      %p14 = scmp.ge.s32.totalorder %s13, 4
      %s20 = sphi 0, %s39
      %s21 = sphi 0, %s35
      %s22 = sphi 0, %s31
      %s23 = sphi 0, %s20
      %s24 = sphi 0, %s21
      %s25 = sphi 0, %s22
      %s26 = sphi 0, %s23
      %s27 = sphi 0, %s24
      %s28 = sphi 0, %s25
      %s46 = sphi 0, %s48
      %s49 = sphi 0, %s46
      %s50 = sphi 0, %s49
      %s66 = sphi 0, %s50
      %s76 = sphi 0, %s78
      %s79 = sphi 0, %s76
      %s80 = sphi 0, %s79
      %s96 = sphi 0, %s80
    $region4: #{tpu_custom_call.1} parent=1 // loop_header_branch
      %16 = sbr.rel (%p14) target = $region8
    $region5: #{tpu_custom_call.1} parent=1 // loop_body
      %s18 = ssub.s32 %s13, 1
      %s19 = ssub.s32 %s13, 2
      %s29 = sadd.s32 1, %s22
      %p30 = scmp.ge.s32.totalorder %s29, 1
      %s31 = scalar_select %p30, 0, %s29
      %s32 = sadd.s32 1, %s21
      %s33 = scalar_select %p30, %s32, %s21
      %p34 = scmp.ge.s32.totalorder %s33, 2
      %s35 = scalar_select %p34, 0, %s33
      %s36 = sadd.s32 1, %s20
      %s37 = scalar_select %p34, %s36, %s20
      %p38 = scmp.ge.s32.totalorder %s37, 1
      %s39 = scalar_select %p38, 0, %s37
      %s40 = ssub.s32 %s20, %s39
      %s41 = ssub.s32 %s21, %s35
      %s42 = sor.u32 %s40, %s41
      %s43 = ssub.s32 %s22, %s31
      %s44 = sor.u32 %s42, %s43
      %p45 = scmp.eq.s32.totalorder %s44, 0
      %s47 = sadd.s32 %s46, 1
      %s48 = scalar_select %p45, %s46, %s47
      %p51 = pneg %p45
      %p52 = scmp.eq.s32.totalorder %s13, 1
      %p53 = por %p51, %p52
      %p54 = scmp.ne.s32.totalorder %s46, %s49
      %p55 = scmp.eq.s32.totalorder %s13, 0
      %p56 = por %p54, %p55
      %p57 = scmp.ne.s32.totalorder %s46, %s49
      %p58 = scmp.eq.s32.totalorder %s18, 1
      %p59 = por %p57, %p58
      %p60 = scmp.ne.s32.totalorder %s49, %s50
      %p61 = scmp.eq.s32.totalorder %s18, 0
      %p62 = por %p60, %p61
      %p63 = scmp.ne.s32.totalorder %s49, %s50
      %p64 = scmp.eq.s32.totalorder %s19, 1
      %p65 = por %p63, %p64
      %p67 = scmp.ne.s32.totalorder %s50, %s66
      %p68 = scmp.eq.s32.totalorder %s19, 0
      %p69 = por %p67, %p68
      %s70 = ssub.s32 %s20, %s39
      %s71 = ssub.s32 %s22, %s31
      %s72 = sor.u32 %s70, %s71
      %s73 = ssub.s32 %s21, %s35
      %s74 = sor.u32 %s72, %s73
      %p75 = scmp.eq.s32.totalorder %s74, 0
      %s77 = sadd.s32 %s76, 1
      %s78 = scalar_select %p75, %s76, %s77
      %p81 = pneg %p75
      %p82 = scmp.eq.s32.totalorder %s13, 1
      %p83 = por %p81, %p82
      %p84 = scmp.ne.s32.totalorder %s76, %s79
      %p85 = scmp.eq.s32.totalorder %s13, 0
      %p86 = por %p84, %p85
      %p87 = scmp.ne.s32.totalorder %s76, %s79
      %p88 = scmp.eq.s32.totalorder %s18, 1
      %p89 = por %p87, %p88
      %p90 = scmp.ne.s32.totalorder %s79, %s80
      %p91 = scmp.eq.s32.totalorder %s18, 0
      %p92 = por %p90, %p91
      %p93 = scmp.ne.s32.totalorder %s79, %s80
      %p94 = scmp.eq.s32.totalorder %s19, 1
      %p95 = por %p93, %p94
      %p97 = scmp.ne.s32.totalorder %s80, %s96
      %p98 = scmp.eq.s32.totalorder %s19, 0
      %p99 = por %p97, %p98
      %p100 = scmp.le.s32.totalorder 1, %s13
      %p101 = scmp.lt.s32.totalorder %s13, 3
      %p102 = pnand %p100, %p101
      %p103 = pneg %p102
      // Predicated region
      $region9: #{tpu_custom_call.1} parent=5 // pred_check
        _
      $region10: #{tpu_custom_call.1} parent=5 // pred_check_branch
        %105 = sbr.rel (%p102) target = $region12
      $region11: #{tpu_custom_call.1} parent=5 // pred_region
        %s106 = ssub.s32 %s13, 1
      $region12: #{tpu_custom_call.1} parent=5 // pred_fallthru
        _
      %p107 = scmp.lt.s32.totalorder %s13, 2
      // Predicated region
      $region13: #{tpu_custom_call.1} parent=5 // pred_check
        %p108 = pneg %p107
      $region14: #{tpu_custom_call.1} parent=5 // pred_check_branch
        %110 = sbr.rel (%p108) target = $region16
      $region15: #{tpu_custom_call.1} parent=5 // pred_region
        // Predicated region
        $region17: #{tpu_custom_call.1} parent=15 // pred_check
          %p111 = pneg %p56
        $region18: #{tpu_custom_call.1} parent=15 // pred_check_branch
          %113 = sbr.rel (%p111) target = $region20
        $region19: #{tpu_custom_call.1} parent=15 // pred_region
          #allocation7 [shape = 'u32[6]{0}', space=smem, size = 0x18, scoped, tag = 'DMA stride descriptor']
          %s114 = sand.u32 %s46, 1
          %s115 = scalar_lea.sflag [#allocation3], %s114
          %s116 = sand.u32 %s46, 1
          %s117 = smul.addr %s116, 2048
          %s118 = scalar_lea.vmem [#allocation2], %s117
          %s119 = smul.u32 2, %s20
          %s120 = smul.u32 64, %s21
          %s121 = smul.u32 2, %s22
          %s123 = ssub.s32 32768, 32768
          %124 = vsyncadd %s115, %s123
          %s125 = smul.addr %s120, 2
          %s126 = sadd.s32 %s121, %s125
          %s127 = smul.addr %s119, 256
          %s128 = sadd.s32 %s126, %s127
          %s129 = smul.addr %s128, 128
          %s130 = scalar_lea.hbm %s0, %s129
          %s132 = sshll.u32 1, 14
          %s133 = sxor.u32 4294967295, %s132
          %s135 = sld [smem:[#allocation0]]
          %s136 = sadd.s32 2, %s135
          %s138 = sshll.u32 7, 26
          %s139 = sxor.u32 4294967295, %s138
          %s140 = sand.u32 0, %s139
          %s141 = sshll.u32 %s136, 26
          %s142 = sor.u32 %s140, %s141
          %s143 = sshll.u32 %s118, 4
          %s144 = int_to_ptr.vmem [resolvable:$true] %s143
          %150 = sst [smem:[#allocation7]] 32768
          %s151 = scalar_lea.smem [#allocation7], 1
          %152 = sst [smem:[%s151]] 16384
          %s153 = scalar_lea.smem [#allocation7], 2
          %154 = sst [smem:[%s153]] 64
          %s155 = scalar_lea.smem [#allocation7], 3
          %156 = sst [smem:[%s155]] 256
          %s157 = scalar_lea.smem [#allocation7], 4
          %158 = sst [smem:[%s157]] 256
          %s159 = scalar_lea.smem [#allocation7], 5
          %160 = sst [smem:[%s159]] 16
          %162 = dma.general %s130, 32768, %s144, %s115, 131072, [#allocation7], %s142, 0
        $region20: #{tpu_custom_call.1} parent=15 // pred_fallthru
          _
      $region16: #{tpu_custom_call.1} parent=5 // pred_fallthru
        _
      %p163 = scmp.le.s32.totalorder 1, %s13
      %p164 = scmp.lt.s32.totalorder %s13, 3
      %p165 = pnand %p163, %p164
      %p166 = pneg %p165
      // Predicated region
      $region21: #{tpu_custom_call.1} parent=5 // pred_check
        _
      $region22: #{tpu_custom_call.1} parent=5 // pred_check_branch
        %168 = sbr.rel (%p165) target = $region24
      $region23: #{tpu_custom_call.1} parent=5 // pred_region
        %s169 = ssub.s32 %s13, 1
        %s170 = sand.u32 %s49, 1
        %s171 = scalar_lea.sflag [#allocation3], %s170
        %s172 = sand.u32 %s49, 1
        %s173 = smul.addr %s172, 2048
        %s174 = scalar_lea.vmem [#allocation2], %s173
        // Predicated region
        $region25: #{tpu_custom_call.1} parent=23 // pred_check
          %p175 = pneg %p62
        $region26: #{tpu_custom_call.1} parent=23 // pred_check_branch
          %177 = sbr.rel (%p175) target = $region28
        $region27: #{tpu_custom_call.1} parent=23 // pred_region
          %178 = dma.done %s171, 32768
        $region28: #{tpu_custom_call.1} parent=23 // pred_fallthru
          _
        %s179 = sand.u32 %s49, 1
        %s180 = scalar_lea.sflag [#allocation3], %s179
        %s181 = sand.u32 %s49, 1
        %s182 = smul.addr %s181, 2048
        %s183 = scalar_lea.vmem [#allocation2], %s182
        %p184 = pneg %p62
        %p185 = pneg %p59
        %p186 = pneg %p92
        %p187 = pneg %p89
        %s188 = sand.u32 %s79, 1
        %s189 = scalar_lea.sflag [#allocation4], %s188
        %s190 = sand.u32 %s79, 1
        %s191 = smul.addr %s190, 2048
        %s192 = scalar_lea.vmem [#allocation5], %s191
        %s193 = smul.u32 2, %s23
        %s194 = smul.u32 64, %s24
        %s195 = smul.u32 2, %s25
        %s196 = smul.u32 2, %s23
        %s197 = smul.u32 32, %s25
        %s198 = smul.u32 4, %s24
        loop: start=0, step=1, limit=2
        $region29: #{tpu_custom_call.1} parent=23 // loop_pre_header
          _
        $region30: #{tpu_custom_call.1} parent=23 // loop_header
          %s200 = sphi 0, %s204
          %p201 = scmp.ge.s32.totalorder %s200, 2
        $region31: #{tpu_custom_call.1} parent=23 // loop_header_branch
          %203 = sbr.rel (%p201) target = $region35
        $region32: #{tpu_custom_call.1} parent=23 // loop_body
          %s205 = smul.u32 %s200, 128
          %s206 = smul.addr %s205, 8
          %s207 = scalar_lea.vmem %s174, %s206 [#allocation2]
          %v208 = vld [vmem:[%s207] sm:$0xff]
          %v209 = vld [vmem:[%s207 + $0x8] sm:$0xff]
          %v210 = vld [vmem:[%s207 + $0x10] sm:$0xff]
          %v211 = vld [vmem:[%s207 + $0x18] sm:$0xff]
          %v212 = vld [vmem:[%s207 + $0x20] sm:$0xff]
          %v213 = vld [vmem:[%s207 + $0x28] sm:$0xff]
          %v214 = vld [vmem:[%s207 + $0x30] sm:$0xff]
          %v215 = vld [vmem:[%s207 + $0x38] sm:$0xff]
          %v216 = vld [vmem:[%s207 + $0x40] sm:$0xff]
          %v217 = vld [vmem:[%s207 + $0x48] sm:$0xff]
          %v218 = vld [vmem:[%s207 + $0x50] sm:$0xff]
          %v219 = vld [vmem:[%s207 + $0x58] sm:$0xff]
          %v220 = vld [vmem:[%s207 + $0x60] sm:$0xff]
          %v221 = vld [vmem:[%s207 + $0x68] sm:$0xff]
          %v222 = vld [vmem:[%s207 + $0x70] sm:$0xff]
          %v223 = vld [vmem:[%s207 + $0x78] sm:$0xff]
          %v224 = vld [vmem:[%s207 + $0x80] sm:$0xff]
          %v225 = vld [vmem:[%s207 + $0x88] sm:$0xff]
          %v226 = vld [vmem:[%s207 + $0x90] sm:$0xff]
          %v227 = vld [vmem:[%s207 + $0x98] sm:$0xff]
          %v228 = vld [vmem:[%s207 + $0xa0] sm:$0xff]
          %v229 = vld [vmem:[%s207 + $0xa8] sm:$0xff]
          %v230 = vld [vmem:[%s207 + $0xb0] sm:$0xff]
          %v231 = vld [vmem:[%s207 + $0xb8] sm:$0xff]
          %v232 = vld [vmem:[%s207 + $0xc0] sm:$0xff]
          %v233 = vld [vmem:[%s207 + $0xc8] sm:$0xff]
          %v234 = vld [vmem:[%s207 + $0xd0] sm:$0xff]
          %v235 = vld [vmem:[%s207 + $0xd8] sm:$0xff]
          %v236 = vld [vmem:[%s207 + $0xe0] sm:$0xff]
          %v237 = vld [vmem:[%s207 + $0xe8] sm:$0xff]
          %v238 = vld [vmem:[%s207 + $0xf0] sm:$0xff]
          %v239 = vld [vmem:[%s207 + $0xf8] sm:$0xff]
          %v240 = vld [vmem:[%s207 + $0x100] sm:$0xff]
          %v241 = vld [vmem:[%s207 + $0x108] sm:$0xff]
          %v242 = vld [vmem:[%s207 + $0x110] sm:$0xff]
          %v243 = vld [vmem:[%s207 + $0x118] sm:$0xff]
          %v244 = vld [vmem:[%s207 + $0x120] sm:$0xff]
          %v245 = vld [vmem:[%s207 + $0x128] sm:$0xff]
          %v246 = vld [vmem:[%s207 + $0x130] sm:$0xff]
          %v247 = vld [vmem:[%s207 + $0x138] sm:$0xff]
          %v248 = vld [vmem:[%s207 + $0x140] sm:$0xff]
          %v249 = vld [vmem:[%s207 + $0x148] sm:$0xff]
          %v250 = vld [vmem:[%s207 + $0x150] sm:$0xff]
          %v251 = vld [vmem:[%s207 + $0x158] sm:$0xff]
          %v252 = vld [vmem:[%s207 + $0x160] sm:$0xff]
          %v253 = vld [vmem:[%s207 + $0x168] sm:$0xff]
          %v254 = vld [vmem:[%s207 + $0x170] sm:$0xff]
          %v255 = vld [vmem:[%s207 + $0x178] sm:$0xff]
          %v256 = vld [vmem:[%s207 + $0x180] sm:$0xff]
          %v257 = vld [vmem:[%s207 + $0x188] sm:$0xff]
          %v258 = vld [vmem:[%s207 + $0x190] sm:$0xff]
          %v259 = vld [vmem:[%s207 + $0x198] sm:$0xff]
          %v260 = vld [vmem:[%s207 + $0x1a0] sm:$0xff]
          %v261 = vld [vmem:[%s207 + $0x1a8] sm:$0xff]
          %v262 = vld [vmem:[%s207 + $0x1b0] sm:$0xff]
          %v263 = vld [vmem:[%s207 + $0x1b8] sm:$0xff]
          %v264 = vld [vmem:[%s207 + $0x1c0] sm:$0xff]
          %v265 = vld [vmem:[%s207 + $0x1c8] sm:$0xff]
          %v266 = vld [vmem:[%s207 + $0x1d0] sm:$0xff]
          %v267 = vld [vmem:[%s207 + $0x1d8] sm:$0xff]
          %v268 = vld [vmem:[%s207 + $0x1e0] sm:$0xff]
          %v269 = vld [vmem:[%s207 + $0x1e8] sm:$0xff]
          %v270 = vld [vmem:[%s207 + $0x1f0] sm:$0xff]
          %v271 = vld [vmem:[%s207 + $0x1f8] sm:$0xff]
          %v272 = vld [vmem:[%s207 + $0x200] sm:$0xff]
          %v273 = vld [vmem:[%s207 + $0x208] sm:$0xff]
          %v274 = vld [vmem:[%s207 + $0x210] sm:$0xff]
          %v275 = vld [vmem:[%s207 + $0x218] sm:$0xff]
          %v276 = vld [vmem:[%s207 + $0x220] sm:$0xff]
          %v277 = vld [vmem:[%s207 + $0x228] sm:$0xff]
          %v278 = vld [vmem:[%s207 + $0x230] sm:$0xff]
          %v279 = vld [vmem:[%s207 + $0x238] sm:$0xff]
          %v280 = vld [vmem:[%s207 + $0x240] sm:$0xff]
          %v281 = vld [vmem:[%s207 + $0x248] sm:$0xff]
          %v282 = vld [vmem:[%s207 + $0x250] sm:$0xff]
          %v283 = vld [vmem:[%s207 + $0x258] sm:$0xff]
          %v284 = vld [vmem:[%s207 + $0x260] sm:$0xff]
          %v285 = vld [vmem:[%s207 + $0x268] sm:$0xff]
          %v286 = vld [vmem:[%s207 + $0x270] sm:$0xff]
          %v287 = vld [vmem:[%s207 + $0x278] sm:$0xff]
          %v288 = vld [vmem:[%s207 + $0x280] sm:$0xff]
          %v289 = vld [vmem:[%s207 + $0x288] sm:$0xff]
          %v290 = vld [vmem:[%s207 + $0x290] sm:$0xff]
          %v291 = vld [vmem:[%s207 + $0x298] sm:$0xff]
          %v292 = vld [vmem:[%s207 + $0x2a0] sm:$0xff]
          %v293 = vld [vmem:[%s207 + $0x2a8] sm:$0xff]
          %v294 = vld [vmem:[%s207 + $0x2b0] sm:$0xff]
          %v295 = vld [vmem:[%s207 + $0x2b8] sm:$0xff]
          %v296 = vld [vmem:[%s207 + $0x2c0] sm:$0xff]
          %v297 = vld [vmem:[%s207 + $0x2c8] sm:$0xff]
          %v298 = vld [vmem:[%s207 + $0x2d0] sm:$0xff]
          %v299 = vld [vmem:[%s207 + $0x2d8] sm:$0xff]
          %v300 = vld [vmem:[%s207 + $0x2e0] sm:$0xff]
          %v301 = vld [vmem:[%s207 + $0x2e8] sm:$0xff]
          %v302 = vld [vmem:[%s207 + $0x2f0] sm:$0xff]
          %v303 = vld [vmem:[%s207 + $0x2f8] sm:$0xff]
          %v304 = vld [vmem:[%s207 + $0x300] sm:$0xff]
          %v305 = vld [vmem:[%s207 + $0x308] sm:$0xff]
          %v306 = vld [vmem:[%s207 + $0x310] sm:$0xff]
          %v307 = vld [vmem:[%s207 + $0x318] sm:$0xff]
          %v308 = vld [vmem:[%s207 + $0x320] sm:$0xff]
          %v309 = vld [vmem:[%s207 + $0x328] sm:$0xff]
          %v310 = vld [vmem:[%s207 + $0x330] sm:$0xff]
          %v311 = vld [vmem:[%s207 + $0x338] sm:$0xff]
          %v312 = vld [vmem:[%s207 + $0x340] sm:$0xff]
          %v313 = vld [vmem:[%s207 + $0x348] sm:$0xff]
          %v314 = vld [vmem:[%s207 + $0x350] sm:$0xff]
          %v315 = vld [vmem:[%s207 + $0x358] sm:$0xff]
          %v316 = vld [vmem:[%s207 + $0x360] sm:$0xff]
          %v317 = vld [vmem:[%s207 + $0x368] sm:$0xff]
          %v318 = vld [vmem:[%s207 + $0x370] sm:$0xff]
          %v319 = vld [vmem:[%s207 + $0x378] sm:$0xff]
          %v320 = vld [vmem:[%s207 + $0x380] sm:$0xff]
          %v321 = vld [vmem:[%s207 + $0x388] sm:$0xff]
          %v322 = vld [vmem:[%s207 + $0x390] sm:$0xff]
          %v323 = vld [vmem:[%s207 + $0x398] sm:$0xff]
          %v324 = vld [vmem:[%s207 + $0x3a0] sm:$0xff]
          %v325 = vld [vmem:[%s207 + $0x3a8] sm:$0xff]
          %v326 = vld [vmem:[%s207 + $0x3b0] sm:$0xff]
          %v327 = vld [vmem:[%s207 + $0x3b8] sm:$0xff]
          %v328 = vld [vmem:[%s207 + $0x3c0] sm:$0xff]
          %v329 = vld [vmem:[%s207 + $0x3c8] sm:$0xff]
          %v330 = vld [vmem:[%s207 + $0x3d0] sm:$0xff]
          %v331 = vld [vmem:[%s207 + $0x3d8] sm:$0xff]
          %v332 = vld [vmem:[%s207 + $0x3e0] sm:$0xff]
          %v333 = vld [vmem:[%s207 + $0x3e8] sm:$0xff]
          %v334 = vld [vmem:[%s207 + $0x3f0] sm:$0xff]
          %v335 = vld [vmem:[%s207 + $0x3f8] sm:$0xff]
          %336 = vxpose.xlu0.b32.start [1/16] %v208, 128
          %337 = vxpose.xlu0.b32.cont [2/16] %v210, 128
          %338 = vxpose.xlu0.b32.cont [3/16] %v212, 128
          %339 = vxpose.xlu0.b32.cont [4/16] %v214, 128
          %340 = vxpose.xlu0.b32.cont [5/16] %v216, 128
          %341 = vxpose.xlu0.b32.cont [6/16] %v218, 128
          %342 = vxpose.xlu0.b32.cont [7/16] %v220, 128
          %343 = vxpose.xlu0.b32.cont [8/16] %v222, 128
          %344 = vxpose.xlu0.b32.cont [9/16] %v224, 128
          %345 = vxpose.xlu0.b32.cont [10/16] %v226, 128
          %346 = vxpose.xlu0.b32.cont [11/16] %v228, 128
          %347 = vxpose.xlu0.b32.cont [12/16] %v230, 128
          %348 = vxpose.xlu0.b32.cont [13/16] %v232, 128
          %349 = vxpose.xlu0.b32.cont [14/16] %v234, 128
          %350 = vxpose.xlu0.b32.cont [15/16] %v236, 128
          %351 = vxpose.xlu0.b32.end [16/16] %v238, 128
          %v352 = vpop.trf.xlu0
          %v353 = vpop.trf.xlu0
          %v354 = vpop.trf.xlu0
          %v355 = vpop.trf.xlu0
          %v356 = vpop.trf.xlu0
          %v357 = vpop.trf.xlu0
          %v358 = vpop.trf.xlu0
          %v359 = vpop.trf.xlu0
          %v360 = vpop.trf.xlu0
          %v361 = vpop.trf.xlu0
          %v362 = vpop.trf.xlu0
          %v363 = vpop.trf.xlu0
          %v364 = vpop.trf.xlu0
          %v365 = vpop.trf.xlu0
          %v366 = vpop.trf.xlu0
          %v367 = vpop.trf.xlu0
          %368 = vxpose.xlu0.b32.start [1/16] %v209, 128
          %369 = vxpose.xlu0.b32.cont [2/16] %v211, 128
          %370 = vxpose.xlu0.b32.cont [3/16] %v213, 128
          %371 = vxpose.xlu0.b32.cont [4/16] %v215, 128
          %372 = vxpose.xlu0.b32.cont [5/16] %v217, 128
          %373 = vxpose.xlu0.b32.cont [6/16] %v219, 128
          %374 = vxpose.xlu0.b32.cont [7/16] %v221, 128
          %375 = vxpose.xlu0.b32.cont [8/16] %v223, 128
          %376 = vxpose.xlu0.b32.cont [9/16] %v225, 128
          %377 = vxpose.xlu0.b32.cont [10/16] %v227, 128
          %378 = vxpose.xlu0.b32.cont [11/16] %v229, 128
          %379 = vxpose.xlu0.b32.cont [12/16] %v231, 128
          %380 = vxpose.xlu0.b32.cont [13/16] %v233, 128
          %381 = vxpose.xlu0.b32.cont [14/16] %v235, 128
          %382 = vxpose.xlu0.b32.cont [15/16] %v237, 128
          %383 = vxpose.xlu0.b32.end [16/16] %v239, 128
          %v384 = vpop.trf.xlu0
          %v385 = vpop.trf.xlu0
          %v386 = vpop.trf.xlu0
          %v387 = vpop.trf.xlu0
          %v388 = vpop.trf.xlu0
          %v389 = vpop.trf.xlu0
          %v390 = vpop.trf.xlu0
          %v391 = vpop.trf.xlu0
          %v392 = vpop.trf.xlu0
          %v393 = vpop.trf.xlu0
          %v394 = vpop.trf.xlu0
          %v395 = vpop.trf.xlu0
          %v396 = vpop.trf.xlu0
          %v397 = vpop.trf.xlu0
          %v398 = vpop.trf.xlu0
          %v399 = vpop.trf.xlu0
          %400 = vxpose.xlu0.b32.start [1/16] %v240, 128
          %401 = vxpose.xlu0.b32.cont [2/16] %v242, 128
          %402 = vxpose.xlu0.b32.cont [3/16] %v244, 128
          %403 = vxpose.xlu0.b32.cont [4/16] %v246, 128
          %404 = vxpose.xlu0.b32.cont [5/16] %v248, 128
          %405 = vxpose.xlu0.b32.cont [6/16] %v250, 128
          %406 = vxpose.xlu0.b32.cont [7/16] %v252, 128
          %407 = vxpose.xlu0.b32.cont [8/16] %v254, 128
          %408 = vxpose.xlu0.b32.cont [9/16] %v256, 128
          %409 = vxpose.xlu0.b32.cont [10/16] %v258, 128
          %410 = vxpose.xlu0.b32.cont [11/16] %v260, 128
          %411 = vxpose.xlu0.b32.cont [12/16] %v262, 128
          %412 = vxpose.xlu0.b32.cont [13/16] %v264, 128
          %413 = vxpose.xlu0.b32.cont [14/16] %v266, 128
          %414 = vxpose.xlu0.b32.cont [15/16] %v268, 128
          %415 = vxpose.xlu0.b32.end [16/16] %v270, 128
          %v416 = vpop.trf.xlu0
          %v417 = vpop.trf.xlu0
          %v418 = vpop.trf.xlu0
          %v419 = vpop.trf.xlu0
          %v420 = vpop.trf.xlu0
          %v421 = vpop.trf.xlu0
          %v422 = vpop.trf.xlu0
          %v423 = vpop.trf.xlu0
          %v424 = vpop.trf.xlu0
          %v425 = vpop.trf.xlu0
          %v426 = vpop.trf.xlu0
          %v427 = vpop.trf.xlu0
          %v428 = vpop.trf.xlu0
          %v429 = vpop.trf.xlu0
          %v430 = vpop.trf.xlu0
          %v431 = vpop.trf.xlu0
          %432 = vxpose.xlu0.b32.start [1/16] %v241, 128
          %433 = vxpose.xlu0.b32.cont [2/16] %v243, 128
          %434 = vxpose.xlu0.b32.cont [3/16] %v245, 128
          %435 = vxpose.xlu0.b32.cont [4/16] %v247, 128
          %436 = vxpose.xlu0.b32.cont [5/16] %v249, 128
          %437 = vxpose.xlu0.b32.cont [6/16] %v251, 128
          %438 = vxpose.xlu0.b32.cont [7/16] %v253, 128
          %439 = vxpose.xlu0.b32.cont [8/16] %v255, 128
          %440 = vxpose.xlu0.b32.cont [9/16] %v257, 128
          %441 = vxpose.xlu0.b32.cont [10/16] %v259, 128
          %442 = vxpose.xlu0.b32.cont [11/16] %v261, 128
          %443 = vxpose.xlu0.b32.cont [12/16] %v263, 128
          %444 = vxpose.xlu0.b32.cont [13/16] %v265, 128
          %445 = vxpose.xlu0.b32.cont [14/16] %v267, 128
          %446 = vxpose.xlu0.b32.cont [15/16] %v269, 128
          %447 = vxpose.xlu0.b32.end [16/16] %v271, 128
          %v448 = vpop.trf.xlu0
          %v449 = vpop.trf.xlu0
          %v450 = vpop.trf.xlu0
          %v451 = vpop.trf.xlu0
          %v452 = vpop.trf.xlu0
          %v453 = vpop.trf.xlu0
          %v454 = vpop.trf.xlu0
          %v455 = vpop.trf.xlu0
          %v456 = vpop.trf.xlu0
          %v457 = vpop.trf.xlu0
          %v458 = vpop.trf.xlu0
          %v459 = vpop.trf.xlu0
          %v460 = vpop.trf.xlu0
          %v461 = vpop.trf.xlu0
          %v462 = vpop.trf.xlu0
          %v463 = vpop.trf.xlu0
          %464 = vxpose.xlu0.b32.start [1/16] %v272, 128
          %465 = vxpose.xlu0.b32.cont [2/16] %v274, 128
          %466 = vxpose.xlu0.b32.cont [3/16] %v276, 128
          %467 = vxpose.xlu0.b32.cont [4/16] %v278, 128
          %468 = vxpose.xlu0.b32.cont [5/16] %v280, 128
          %469 = vxpose.xlu0.b32.cont [6/16] %v282, 128
          %470 = vxpose.xlu0.b32.cont [7/16] %v284, 128
          %471 = vxpose.xlu0.b32.cont [8/16] %v286, 128
          %472 = vxpose.xlu0.b32.cont [9/16] %v288, 128
          %473 = vxpose.xlu0.b32.cont [10/16] %v290, 128
          %474 = vxpose.xlu0.b32.cont [11/16] %v292, 128
          %475 = vxpose.xlu0.b32.cont [12/16] %v294, 128
          %476 = vxpose.xlu0.b32.cont [13/16] %v296, 128
          %477 = vxpose.xlu0.b32.cont [14/16] %v298, 128
          %478 = vxpose.xlu0.b32.cont [15/16] %v300, 128
          %479 = vxpose.xlu0.b32.end [16/16] %v302, 128
          %v480 = vpop.trf.xlu0
          %v481 = vpop.trf.xlu0
          %v482 = vpop.trf.xlu0
          %v483 = vpop.trf.xlu0
          %v484 = vpop.trf.xlu0
          %v485 = vpop.trf.xlu0
          %v486 = vpop.trf.xlu0
          %v487 = vpop.trf.xlu0
          %v488 = vpop.trf.xlu0
          %v489 = vpop.trf.xlu0
          %v490 = vpop.trf.xlu0
          %v491 = vpop.trf.xlu0
          %v492 = vpop.trf.xlu0
          %v493 = vpop.trf.xlu0
          %v494 = vpop.trf.xlu0
          %v495 = vpop.trf.xlu0
          %496 = vxpose.xlu0.b32.start [1/16] %v273, 128
          %497 = vxpose.xlu0.b32.cont [2/16] %v275, 128
          %498 = vxpose.xlu0.b32.cont [3/16] %v277, 128
          %499 = vxpose.xlu0.b32.cont [4/16] %v279, 128
          %500 = vxpose.xlu0.b32.cont [5/16] %v281, 128
          %501 = vxpose.xlu0.b32.cont [6/16] %v283, 128
          %502 = vxpose.xlu0.b32.cont [7/16] %v285, 128
          %503 = vxpose.xlu0.b32.cont [8/16] %v287, 128
          %504 = vxpose.xlu0.b32.cont [9/16] %v289, 128
          %505 = vxpose.xlu0.b32.cont [10/16] %v291, 128
          %506 = vxpose.xlu0.b32.cont [11/16] %v293, 128
          %507 = vxpose.xlu0.b32.cont [12/16] %v295, 128
          %508 = vxpose.xlu0.b32.cont [13/16] %v297, 128
          %509 = vxpose.xlu0.b32.cont [14/16] %v299, 128
          %510 = vxpose.xlu0.b32.cont [15/16] %v301, 128
          %511 = vxpose.xlu0.b32.end [16/16] %v303, 128
          %v512 = vpop.trf.xlu0
          %v513 = vpop.trf.xlu0
          %v514 = vpop.trf.xlu0
          %v515 = vpop.trf.xlu0
          %v516 = vpop.trf.xlu0
          %v517 = vpop.trf.xlu0
          %v518 = vpop.trf.xlu0
          %v519 = vpop.trf.xlu0
          %v520 = vpop.trf.xlu0
          %v521 = vpop.trf.xlu0
          %v522 = vpop.trf.xlu0
          %v523 = vpop.trf.xlu0
          %v524 = vpop.trf.xlu0
          %v525 = vpop.trf.xlu0
          %v526 = vpop.trf.xlu0
          %v527 = vpop.trf.xlu0
          %528 = vxpose.xlu0.b32.start [1/16] %v304, 128
          %529 = vxpose.xlu0.b32.cont [2/16] %v306, 128
          %530 = vxpose.xlu0.b32.cont [3/16] %v308, 128
          %531 = vxpose.xlu0.b32.cont [4/16] %v310, 128
          %532 = vxpose.xlu0.b32.cont [5/16] %v312, 128
          %533 = vxpose.xlu0.b32.cont [6/16] %v314, 128
          %534 = vxpose.xlu0.b32.cont [7/16] %v316, 128
          %535 = vxpose.xlu0.b32.cont [8/16] %v318, 128
          %536 = vxpose.xlu0.b32.cont [9/16] %v320, 128
          %537 = vxpose.xlu0.b32.cont [10/16] %v322, 128
          %538 = vxpose.xlu0.b32.cont [11/16] %v324, 128
          %539 = vxpose.xlu0.b32.cont [12/16] %v326, 128
          %540 = vxpose.xlu0.b32.cont [13/16] %v328, 128
          %541 = vxpose.xlu0.b32.cont [14/16] %v330, 128
          %542 = vxpose.xlu0.b32.cont [15/16] %v332, 128
          %543 = vxpose.xlu0.b32.end [16/16] %v334, 128
          %v544 = vpop.trf.xlu0
          %v545 = vpop.trf.xlu0
          %v546 = vpop.trf.xlu0
          %v547 = vpop.trf.xlu0
          %v548 = vpop.trf.xlu0
          %v549 = vpop.trf.xlu0
          %v550 = vpop.trf.xlu0
          %v551 = vpop.trf.xlu0
          %v552 = vpop.trf.xlu0
          %v553 = vpop.trf.xlu0
          %v554 = vpop.trf.xlu0
          %v555 = vpop.trf.xlu0
          %v556 = vpop.trf.xlu0
          %v557 = vpop.trf.xlu0
          %v558 = vpop.trf.xlu0
          %v559 = vpop.trf.xlu0
          %560 = vxpose.xlu0.b32.start [1/16] %v305, 128
          %561 = vxpose.xlu0.b32.cont [2/16] %v307, 128
          %562 = vxpose.xlu0.b32.cont [3/16] %v309, 128
          %563 = vxpose.xlu0.b32.cont [4/16] %v311, 128
          %564 = vxpose.xlu0.b32.cont [5/16] %v313, 128
          %565 = vxpose.xlu0.b32.cont [6/16] %v315, 128
          %566 = vxpose.xlu0.b32.cont [7/16] %v317, 128
          %567 = vxpose.xlu0.b32.cont [8/16] %v319, 128
          %568 = vxpose.xlu0.b32.cont [9/16] %v321, 128
          %569 = vxpose.xlu0.b32.cont [10/16] %v323, 128
          %570 = vxpose.xlu0.b32.cont [11/16] %v325, 128
          %571 = vxpose.xlu0.b32.cont [12/16] %v327, 128
          %572 = vxpose.xlu0.b32.cont [13/16] %v329, 128
          %573 = vxpose.xlu0.b32.cont [14/16] %v331, 128
          %574 = vxpose.xlu0.b32.cont [15/16] %v333, 128
          %575 = vxpose.xlu0.b32.end [16/16] %v335, 128
          %v576 = vpop.trf.xlu0
          %v577 = vpop.trf.xlu0
          %v578 = vpop.trf.xlu0
          %v579 = vpop.trf.xlu0
          %v580 = vpop.trf.xlu0
          %v581 = vpop.trf.xlu0
          %v582 = vpop.trf.xlu0
          %v583 = vpop.trf.xlu0
          %v584 = vpop.trf.xlu0
          %v585 = vpop.trf.xlu0
          %v586 = vpop.trf.xlu0
          %v587 = vpop.trf.xlu0
          %v588 = vpop.trf.xlu0
          %v589 = vpop.trf.xlu0
          %v590 = vpop.trf.xlu0
          %v591 = vpop.trf.xlu0
          %s592 = smul.addr %s205, 8
          %s593 = scalar_lea.vmem %s192, %s592 [#allocation5]
          %594 = vst [vmem:[%s593] sm:$0xff] %v352
          %595 = vst [vmem:[%s593 + $0x8] sm:$0xff] %v416
          %596 = vst [vmem:[%s593 + $0x10] sm:$0xff] %v480
          %597 = vst [vmem:[%s593 + $0x18] sm:$0xff] %v544
          %598 = vst [vmem:[%s593 + $0x20] sm:$0xff] %v353
          %599 = vst [vmem:[%s593 + $0x28] sm:$0xff] %v417
          %600 = vst [vmem:[%s593 + $0x30] sm:$0xff] %v481
          %601 = vst [vmem:[%s593 + $0x38] sm:$0xff] %v545
          %602 = vst [vmem:[%s593 + $0x40] sm:$0xff] %v354
          %603 = vst [vmem:[%s593 + $0x48] sm:$0xff] %v418
          %604 = vst [vmem:[%s593 + $0x50] sm:$0xff] %v482
          %605 = vst [vmem:[%s593 + $0x58] sm:$0xff] %v546
          %606 = vst [vmem:[%s593 + $0x60] sm:$0xff] %v355
          %607 = vst [vmem:[%s593 + $0x68] sm:$0xff] %v419
          %608 = vst [vmem:[%s593 + $0x70] sm:$0xff] %v483
          %609 = vst [vmem:[%s593 + $0x78] sm:$0xff] %v547
          %610 = vst [vmem:[%s593 + $0x80] sm:$0xff] %v356
          %611 = vst [vmem:[%s593 + $0x88] sm:$0xff] %v420
          %612 = vst [vmem:[%s593 + $0x90] sm:$0xff] %v484
          %613 = vst [vmem:[%s593 + $0x98] sm:$0xff] %v548
          %614 = vst [vmem:[%s593 + $0xa0] sm:$0xff] %v357
          %615 = vst [vmem:[%s593 + $0xa8] sm:$0xff] %v421
          %616 = vst [vmem:[%s593 + $0xb0] sm:$0xff] %v485
          %617 = vst [vmem:[%s593 + $0xb8] sm:$0xff] %v549
          %618 = vst [vmem:[%s593 + $0xc0] sm:$0xff] %v358
          %619 = vst [vmem:[%s593 + $0xc8] sm:$0xff] %v422
          %620 = vst [vmem:[%s593 + $0xd0] sm:$0xff] %v486
          %621 = vst [vmem:[%s593 + $0xd8] sm:$0xff] %v550
          %622 = vst [vmem:[%s593 + $0xe0] sm:$0xff] %v359
          %623 = vst [vmem:[%s593 + $0xe8] sm:$0xff] %v423
          %624 = vst [vmem:[%s593 + $0xf0] sm:$0xff] %v487
          %625 = vst [vmem:[%s593 + $0xf8] sm:$0xff] %v551
          %626 = vst [vmem:[%s593 + $0x100] sm:$0xff] %v360
          %627 = vst [vmem:[%s593 + $0x108] sm:$0xff] %v424
          %628 = vst [vmem:[%s593 + $0x110] sm:$0xff] %v488
          %629 = vst [vmem:[%s593 + $0x118] sm:$0xff] %v552
          %630 = vst [vmem:[%s593 + $0x120] sm:$0xff] %v361
          %631 = vst [vmem:[%s593 + $0x128] sm:$0xff] %v425
          %632 = vst [vmem:[%s593 + $0x130] sm:$0xff] %v489
          %633 = vst [vmem:[%s593 + $0x138] sm:$0xff] %v553
          %634 = vst [vmem:[%s593 + $0x140] sm:$0xff] %v362
          %635 = vst [vmem:[%s593 + $0x148] sm:$0xff] %v426
          %636 = vst [vmem:[%s593 + $0x150] sm:$0xff] %v490
          %637 = vst [vmem:[%s593 + $0x158] sm:$0xff] %v554
          %638 = vst [vmem:[%s593 + $0x160] sm:$0xff] %v363
          %639 = vst [vmem:[%s593 + $0x168] sm:$0xff] %v427
          %640 = vst [vmem:[%s593 + $0x170] sm:$0xff] %v491
          %641 = vst [vmem:[%s593 + $0x178] sm:$0xff] %v555
          %642 = vst [vmem:[%s593 + $0x180] sm:$0xff] %v364
          %643 = vst [vmem:[%s593 + $0x188] sm:$0xff] %v428
          %644 = vst [vmem:[%s593 + $0x190] sm:$0xff] %v492
          %645 = vst [vmem:[%s593 + $0x198] sm:$0xff] %v556
          %646 = vst [vmem:[%s593 + $0x1a0] sm:$0xff] %v365
          %647 = vst [vmem:[%s593 + $0x1a8] sm:$0xff] %v429
          %648 = vst [vmem:[%s593 + $0x1b0] sm:$0xff] %v493
          %649 = vst [vmem:[%s593 + $0x1b8] sm:$0xff] %v557
          %650 = vst [vmem:[%s593 + $0x1c0] sm:$0xff] %v366
          %651 = vst [vmem:[%s593 + $0x1c8] sm:$0xff] %v430
          %652 = vst [vmem:[%s593 + $0x1d0] sm:$0xff] %v494
          %653 = vst [vmem:[%s593 + $0x1d8] sm:$0xff] %v558
          %654 = vst [vmem:[%s593 + $0x1e0] sm:$0xff] %v367
          %655 = vst [vmem:[%s593 + $0x1e8] sm:$0xff] %v431
          %656 = vst [vmem:[%s593 + $0x1f0] sm:$0xff] %v495
          %657 = vst [vmem:[%s593 + $0x1f8] sm:$0xff] %v559
          %658 = vst [vmem:[%s593 + $0x200] sm:$0xff] %v384
          %659 = vst [vmem:[%s593 + $0x208] sm:$0xff] %v448
          %660 = vst [vmem:[%s593 + $0x210] sm:$0xff] %v512
          %661 = vst [vmem:[%s593 + $0x218] sm:$0xff] %v576
          %662 = vst [vmem:[%s593 + $0x220] sm:$0xff] %v385
          %663 = vst [vmem:[%s593 + $0x228] sm:$0xff] %v449
          %664 = vst [vmem:[%s593 + $0x230] sm:$0xff] %v513
          %665 = vst [vmem:[%s593 + $0x238] sm:$0xff] %v577
          %666 = vst [vmem:[%s593 + $0x240] sm:$0xff] %v386
          %667 = vst [vmem:[%s593 + $0x248] sm:$0xff] %v450
          %668 = vst [vmem:[%s593 + $0x250] sm:$0xff] %v514
          %669 = vst [vmem:[%s593 + $0x258] sm:$0xff] %v578
          %670 = vst [vmem:[%s593 + $0x260] sm:$0xff] %v387
          %671 = vst [vmem:[%s593 + $0x268] sm:$0xff] %v451
          %672 = vst [vmem:[%s593 + $0x270] sm:$0xff] %v515
          %673 = vst [vmem:[%s593 + $0x278] sm:$0xff] %v579
          %674 = vst [vmem:[%s593 + $0x280] sm:$0xff] %v388
          %675 = vst [vmem:[%s593 + $0x288] sm:$0xff] %v452
          %676 = vst [vmem:[%s593 + $0x290] sm:$0xff] %v516
          %677 = vst [vmem:[%s593 + $0x298] sm:$0xff] %v580
          %678 = vst [vmem:[%s593 + $0x2a0] sm:$0xff] %v389
          %679 = vst [vmem:[%s593 + $0x2a8] sm:$0xff] %v453
          %680 = vst [vmem:[%s593 + $0x2b0] sm:$0xff] %v517
          %681 = vst [vmem:[%s593 + $0x2b8] sm:$0xff] %v581
          %682 = vst [vmem:[%s593 + $0x2c0] sm:$0xff] %v390
          %683 = vst [vmem:[%s593 + $0x2c8] sm:$0xff] %v454
          %684 = vst [vmem:[%s593 + $0x2d0] sm:$0xff] %v518
          %685 = vst [vmem:[%s593 + $0x2d8] sm:$0xff] %v582
          %686 = vst [vmem:[%s593 + $0x2e0] sm:$0xff] %v391
          %687 = vst [vmem:[%s593 + $0x2e8] sm:$0xff] %v455
          %688 = vst [vmem:[%s593 + $0x2f0] sm:$0xff] %v519
          %689 = vst [vmem:[%s593 + $0x2f8] sm:$0xff] %v583
          %690 = vst [vmem:[%s593 + $0x300] sm:$0xff] %v392
          %691 = vst [vmem:[%s593 + $0x308] sm:$0xff] %v456
          %692 = vst [vmem:[%s593 + $0x310] sm:$0xff] %v520
          %693 = vst [vmem:[%s593 + $0x318] sm:$0xff] %v584
          %694 = vst [vmem:[%s593 + $0x320] sm:$0xff] %v393
          %695 = vst [vmem:[%s593 + $0x328] sm:$0xff] %v457
          %696 = vst [vmem:[%s593 + $0x330] sm:$0xff] %v521
          %697 = vst [vmem:[%s593 + $0x338] sm:$0xff] %v585
          %698 = vst [vmem:[%s593 + $0x340] sm:$0xff] %v394
          %699 = vst [vmem:[%s593 + $0x348] sm:$0xff] %v458
          %700 = vst [vmem:[%s593 + $0x350] sm:$0xff] %v522
          %701 = vst [vmem:[%s593 + $0x358] sm:$0xff] %v586
          %702 = vst [vmem:[%s593 + $0x360] sm:$0xff] %v395
          %703 = vst [vmem:[%s593 + $0x368] sm:$0xff] %v459
          %704 = vst [vmem:[%s593 + $0x370] sm:$0xff] %v523
          %705 = vst [vmem:[%s593 + $0x378] sm:$0xff] %v587
          %706 = vst [vmem:[%s593 + $0x380] sm:$0xff] %v396
          %707 = vst [vmem:[%s593 + $0x388] sm:$0xff] %v460
          %708 = vst [vmem:[%s593 + $0x390] sm:$0xff] %v524
          %709 = vst [vmem:[%s593 + $0x398] sm:$0xff] %v588
          %710 = vst [vmem:[%s593 + $0x3a0] sm:$0xff] %v397
          %711 = vst [vmem:[%s593 + $0x3a8] sm:$0xff] %v461
          %712 = vst [vmem:[%s593 + $0x3b0] sm:$0xff] %v525
          %713 = vst [vmem:[%s593 + $0x3b8] sm:$0xff] %v589
          %714 = vst [vmem:[%s593 + $0x3c0] sm:$0xff] %v398
          %715 = vst [vmem:[%s593 + $0x3c8] sm:$0xff] %v462
          %716 = vst [vmem:[%s593 + $0x3d0] sm:$0xff] %v526
          %717 = vst [vmem:[%s593 + $0x3d8] sm:$0xff] %v590
          %718 = vst [vmem:[%s593 + $0x3e0] sm:$0xff] %v399
          %719 = vst [vmem:[%s593 + $0x3e8] sm:$0xff] %v463
          %720 = vst [vmem:[%s593 + $0x3f0] sm:$0xff] %v527
          %721 = vst [vmem:[%s593 + $0x3f8] sm:$0xff] %v591
        $region33: #{tpu_custom_call.1} parent=23 // loop_footer
          %s204 = sadd.s32 1, %s200
        $region34: #{tpu_custom_call.1} parent=23 // loop_footer_branch
          %199 = sbr.rel target = $region30
        $region35: #{tpu_custom_call.1} parent=23 // loop_exit
          _
        %s722 = sand.u32 %s79, 1
        %s723 = scalar_lea.sflag [#allocation4], %s722
        %s724 = sand.u32 %s79, 1
        %s725 = smul.addr %s724, 2048
        %s726 = scalar_lea.vmem [#allocation5], %s725
        // Predicated region
        $region36: #{tpu_custom_call.1} parent=23 // pred_check
          %p727 = pneg %p89
        $region37: #{tpu_custom_call.1} parent=23 // pred_check_branch
          %729 = sbr.rel (%p727) target = $region39
        $region38: #{tpu_custom_call.1} parent=23 // pred_region
          %s730 = smul.u32 2, %s23
          %s731 = smul.u32 32, %s25
          %s732 = smul.u32 4, %s24
          %s734 = ssub.s32 32768, 32768
          %735 = vsyncadd %s723, %s734
          %s736 = smul.addr %s731, 8
          %s737 = sadd.s32 %s732, %s736
          %s738 = smul.addr %s730, 256
          %s739 = sadd.s32 %s737, %s738
          %s740 = smul.addr %s739, 128
          %s741 = scalar_lea.hbm %s1, %s740
          %s742 = sshll.u32 %s726, 4
          %s743 = int_to_ptr.vmem [resolvable:$true] %s742
          %748 = dma.vmem_to_hbm [thread:$0]  %s743, 32768, %s741, %s723, 512, 1024, 32
        $region39: #{tpu_custom_call.1} parent=23 // pred_fallthru
          _
      $region24: #{tpu_custom_call.1} parent=5 // pred_fallthru
        _
      %p749 = scmp.le.s32.totalorder 2, %s13
      // Predicated region
      $region40: #{tpu_custom_call.1} parent=5 // pred_check
        %p750 = pneg %p749
      $region41: #{tpu_custom_call.1} parent=5 // pred_check_branch
        %752 = sbr.rel (%p750) target = $region43
      $region42: #{tpu_custom_call.1} parent=5 // pred_region
        %s753 = ssub.s32 %s13, 2
        // Predicated region
        $region44: #{tpu_custom_call.1} parent=42 // pred_check
          %p754 = pneg %p95
        $region45: #{tpu_custom_call.1} parent=42 // pred_check_branch
          %756 = sbr.rel (%p754) target = $region47
        $region46: #{tpu_custom_call.1} parent=42 // pred_region
          %s757 = sand.u32 %s80, 1
          %s758 = scalar_lea.sflag [#allocation4], %s757
          %s759 = sand.u32 %s80, 1
          %s760 = smul.addr %s759, 2048
          %s761 = scalar_lea.vmem [#allocation5], %s760
          %762 = dma.done %s758, 32768
        $region47: #{tpu_custom_call.1} parent=42 // pred_fallthru
          _
      $region43: #{tpu_custom_call.1} parent=5 // pred_fallthru
        _
    $region6: #{tpu_custom_call.1} parent=1 // loop_footer
      %s17 = sadd.s32 1, %s13
    $region7: #{tpu_custom_call.1} parent=1 // loop_footer_branch
      %12 = sbr.rel target = $region3
    $region8: #{tpu_custom_call.1} parent=1 // loop_exit
      _
    %763 = vsyncpa [#allocation3], 1
    %s764 = scalar_lea.sflag [#allocation3], 1
    %765 = vsyncpa %s764, 1
    %766 = vsyncpa [#allocation4], 1
    %s767 = scalar_lea.sflag [#allocation4], 1
    %768 = vsyncpa %s767, 1

</llo_original>
